<compile_context>
chip_gen: v7x
topology: tpu7x:2x2x1
jax: 0.10.0
libtpu: 0.0.40
codegen_flags: <defaults>
</compile_context>

<pallas_src>
import functools

import jax
import jax.numpy as jnp
from jax import lax
from jax.experimental import pallas as pl
from jax.experimental.pallas import tpu as pltpu


NEG_BIG = -1e30  # "minus infinity" that stays finite under f32 arithmetic


def _round_up(x, m):
  return ((x + m - 1) // m) * m


def _pick_tiles(n):
  """Row tile TM, column tile TN, padded size Np (all multiples of 128)."""
  np_ = _round_up(max(n, 8), 128)
  tn = 256 if np_ >= 256 else np_
  np_ = _round_up(np_, tn)
  tm = None
  # Prefer a large row tile (less column re-streaming) but keep >= 2 row tiles
  # whenever possible so both v7x TensorCores get work.
  for cand in (512, 384, 256, 128):
    if cand <= np_ and np_ % cand == 0 and np_ // cand >= 2:
      tm = cand
      break
  if tm is None:
    tm = np_
  return tm, tn, np_


# -----------------------------------------------------------------------------
# Main streaming-softmax kernel.  grid = (row tiles "parallel",
#                                         column tiles "arbitrary")
# Per anchor row r it emits:
#   sms_out[r]    = sum_{c positive, c != r} s[r, c]        (s already /temp)
#   logden_out[r] = log( sum_{c != r} exp(s[r, c]) / per_ins_weight[r, c] )
# The final loss (divide by analytic positive counts, mean) is done in the
# wrapper.
# -----------------------------------------------------------------------------
def _supcon_main_kernel(lab_rows_ref, colpack_ref, rows_ref, cols_ref,
                        sms_out_ref, logden_out_ref, *scratch,
                        tm, tn, const_shift, use_const_max):
  i = pl.program_id(0)
  k = pl.program_id(1)

  if not use_const_max:
    (m_s,) = scratch

  @pl.when(k == 0)
  def _init():
    sms_out_ref[...] = jnp.zeros((tm, 1), jnp.float32)
    logden_out_ref[...] = jnp.zeros((tm, 1), jnp.float32)  # running exp-sum
    if not use_const_max:
      m_s[...] = jnp.full((tm, 1), NEG_BIG, jnp.float32)

  lab_r = lab_rows_ref[...]                      # (TM, 1) f32 (padded rows: -1)
  cp = colpack_ref[...]                          # (8, TN) f32 packed columns
  lab_c = cp[0:1, :]                             # col labels (padded: -1)
  inv_c = cp[1:2, :]                             # 1/count          (0 on pad)
  inv_cm1 = cp[2:3, :]                           # 1/clamp(count-1) (0 on pad)

  # MXU: the 1/temperature scale is folded into the row operand in the wrapper.
  s = lax.dot_general(rows_ref[...], cols_ref[...], (((1,), (1,)), ((), ())),
                      preferred_element_type=jnp.float32)          # (TM, TN)

  same = lab_r == lab_c                                            # (TM, TN)
  w = jnp.where(same, inv_cm1, inv_c)       # class-balanced 1/per_ins_weight
  ps = jnp.where(same, s, 0.0)              # positive logits

  if use_const_max:
    # L2-normalized features: row max == self-similarity == 1/temperature.
    e = jnp.exp(s - const_shift)
    logden_out_ref[...] += jnp.sum(e * w, axis=1, keepdims=True)
  else:
    m_prev = m_s[...]
    m_new = jnp.maximum(m_prev, jnp.max(s, axis=1, keepdims=True))
    alpha = jnp.exp(m_prev - m_new)
    e = jnp.exp(s - m_new)
    logden_out_ref[...] = (alpha * logden_out_ref[...]
                           + jnp.sum(e * w, axis=1, keepdims=True))
    m_s[...] = m_new
  sms_out_ref[...] += jnp.sum(ps, axis=1, keepdims=True)

  # Self-column correction: only tiles that contain global diagonal entries.
  has_diag = (i * tm < (k + 1) * tn) & (k * tn < (i + 1) * tm)

  @pl.when(has_diag)
  def _fix_self():
    row_g = i * tm + lax.broadcasted_iota(jnp.int32, (tm, 1), 0)
    col_g = k * tn + lax.broadcasted_iota(jnp.int32, (1, tn), 1)
    self_m = row_g == col_g
    logden_out_ref[...] -= jnp.sum(jnp.where(self_m, e * inv_cm1, 0.0),
                                   axis=1, keepdims=True)
    sms_out_ref[...] -= jnp.sum(jnp.where(self_m, s, 0.0),
                                axis=1, keepdims=True)

  @pl.when(k == pl.num_programs(1) - 1)
  def _finalize():
    shift = const_shift if use_const_max else m_s[...]
    logden_out_ref[...] = shift + jnp.log(logden_out_ref[...])


# -----------------------------------------------------------------------------
# Centroid ("average") kernel: out[r] = sum_j avg_dot[r, j] * (2*mask[r,j]-1)
# (the reference's -log(exp(d*m)/exp(d*(1-m))) == -d*(2m-1)).
# -----------------------------------------------------------------------------
def _supcon_avg_kernel(lab_rows_ref, cent_cls_ref, rows_ref, avg_ref, out_ref):
  d = lax.dot_general(rows_ref[...], avg_ref[...], (((1,), (1,)), ((), ())),
                      preferred_element_type=jnp.float32)          # (TM, CKp)
  sign = jnp.where(lab_rows_ref[...] == cent_cls_ref[...], 1.0, -1.0)
  out_ref[...] = jnp.sum(d * sign, axis=1, keepdims=True)


# -----------------------------------------------------------------------------
# Wrapper
# -----------------------------------------------------------------------------
def supcon_loss(features, labels, average=None, *, num_classes,
                temperature=0.1, warmup=False, assume_normalized=True):
  """features: [B, V, D] f32, labels: [B] int, average: [C, K, D] f32."""
  B, V, D = features.shape
  assert V == 2, "reference module hardcodes 2 views (labels.repeat(2, 1))"
  N = V * B
  compute_avg = not warmup
  if compute_avg:
    assert average is not None
    C, K, Da = average.shape
    assert Da == D and C == num_classes

  inv_temp = float(1.0 / temperature)

  # torch.cat(torch.unbind(features, dim=1), dim=0) -> view-major [N, D]
  anchor = jnp.transpose(features, (1, 0, 2)).reshape(N, D)
  labels = labels.astype(jnp.int32)
  labels_rep = jnp.tile(labels, (V,))

  cls_count = jnp.sum(jax.nn.one_hot(labels, num_classes, dtype=jnp.float32),
                      axis=0)
  cnt = cls_count[labels_rep]                                     # [N]
  inv_c = 1.0 / jnp.where(cnt < 1e-6, 1.0, cnt)
  inv_cm1 = 1.0 / jnp.where(cnt - 1.0 < 1e-6, 1.0, cnt - 1.0)
  mask_pos = V * cnt - 1.0          # analytic positives per row (>= 1 always)

  TM, TN, Np = _pick_tiles(N)
  Dp = _round_up(D, 128)

  # bf16 MXU operands; 1/temperature folded into the row operand only.
  rows_scaled = jnp.zeros((Np, Dp), jnp.bfloat16).at[:N, :D].set(
      (anchor * inv_temp).astype(jnp.bfloat16))
  cols = jnp.zeros((Np, Dp), jnp.bfloat16).at[:N, :D].set(
      anchor.astype(jnp.bfloat16))

  lab_f = jnp.full((Np,), -1.0, jnp.float32).at[:N].set(
      labels_rep.astype(jnp.float32))
  lab_rows = lab_f.reshape(Np, 1)
  # Packed per-column rows: row0 = labels, row1 = 1/count, row2 = 1/(count-1).
  colpack = (jnp.zeros((8, Np), jnp.float32)
             .at[0, :].set(lab_f)
             .at[1, :N].set(inv_c)
             .at[2, :N].set(inv_cm1))

  grid = (Np // TM, Np // TN)

  try:
    vmem_cap = int(getattr(pltpu.get_tpu_info(), "vmem_capacity_bytes",
                           64 * 1024 * 1024))
  except Exception:  # pragma: no cover - hardware query not available
    vmem_cap = 64 * 1024 * 1024
  est = (2 * 2 * TM * Dp + 2 * 2 * TN * Dp      # bf16 row/col blocks (x2 bufs)
         + 2 * 4 * 8 * TN + 2 * 4 * TM          # colpack + row labels
         + 2 * 2 * 4 * TM                       # two (TM,1) f32 outputs
         + 8 * TM * TN * 4                      # (TM,TN) f32 intermediates
         + 256 * 1024)
  vmem_limit = int(min(3 * vmem_cap // 4, max(32 * 1024 * 1024, 2 * est)))

  kernel = functools.partial(
      _supcon_main_kernel, tm=TM, tn=TN, const_shift=inv_temp,
      use_const_max=bool(assume_normalized))
  scratch_shapes = ([] if assume_normalized
                    else [pltpu.VMEM((TM, 1), jnp.float32)])

  sms_rows, logden_rows = pl.pallas_call(
      kernel,
      out_shape=(jax.ShapeDtypeStruct((Np, 1), jnp.float32),
                 jax.ShapeDtypeStruct((Np, 1), jnp.float32)),
      grid_spec=pltpu.PrefetchScalarGridSpec(
          num_scalar_prefetch=0,
          grid=grid,
          in_specs=[
              pl.BlockSpec((TM, 1), lambda i, k: (i, 0)),    # row labels
              pl.BlockSpec((8, TN), lambda i, k: (0, k)),    # packed col rows
              pl.BlockSpec((TM, Dp), lambda i, k: (i, 0)),   # scaled rows
              pl.BlockSpec((TN, Dp), lambda i, k: (k, 0)),   # streamed cols
          ],
          out_specs=(pl.BlockSpec((TM, 1), lambda i, k: (i, 0)),
                     pl.BlockSpec((TM, 1), lambda i, k: (i, 0))),
          scratch_shapes=scratch_shapes),
      compiler_params=pltpu.CompilerParams(
          dimension_semantics=("parallel", "arbitrary"),
          vmem_limit_bytes=vmem_limit),
      cost_estimate=pl.CostEstimate(
          flops=int(2 * Np * Np * Dp),
          transcendentals=int(Np * Np + Np),
          bytes_accessed=int(2 * Np * Dp * (1 + grid[0]) + Np * 48)),
  )(lab_rows, colpack, rows_scaled, cols)

  # Finalize per-row loss in the wrapper (analytic positive counts).
  sms = sms_rows[:N, 0]
  logden = logden_rows[:N, 0]
  mean_lpp = (sms - mask_pos * logden) / jnp.maximum(mask_pos, 1.0)
  loss = jnp.mean(-mean_lpp)

  if warmup:
    return loss

  # ---- centroid / "average" branch: its own tiny kernel (not resident in the
  # main kernel's VMEM), uses the unscaled anchor like the reference ----------
  CK = C * K
  CKp = _round_up(CK, 128)
  avg_p = jnp.zeros((CKp, Dp), jnp.bfloat16).at[:CK, :D].set(
      average.reshape(CK, D).astype(jnp.bfloat16))
  cent_cls = jnp.full((CKp,), -7.0, jnp.float32).at[:CK].set(
      (jnp.arange(CK, dtype=jnp.int32) // K).astype(jnp.float32)).reshape(1, CKp)

  avg_rows = pl.pallas_call(
      _supcon_avg_kernel,
      out_shape=jax.ShapeDtypeStruct((Np, 1), jnp.float32),
      grid_spec=pltpu.PrefetchScalarGridSpec(
          num_scalar_prefetch=0,
          grid=(Np // TM,),
          in_specs=[
              pl.BlockSpec((TM, 1), lambda i: (i, 0)),
              pl.BlockSpec((1, CKp), lambda i: (0, 0)),
              pl.BlockSpec((TM, Dp), lambda i: (i, 0)),
              pl.BlockSpec((CKp, Dp), lambda i: (0, 0)),
          ],
          out_specs=pl.BlockSpec((TM, 1), lambda i: (i, 0))),
      compiler_params=pltpu.CompilerParams(
          dimension_semantics=("parallel",),
          vmem_limit_bytes=vmem_limit),
      cost_estimate=pl.CostEstimate(
          flops=int(2 * Np * CKp * Dp),
          transcendentals=0,
          bytes_accessed=int(Np * Dp * 2 + (Np // TM) * CKp * Dp * 2 + Np * 8)),
  )(lab_rows, cent_cls, cols, avg_p)

  avg_loss = -jnp.sum(avg_rows[:N, 0]) / (N * C * K)
  return loss, avg_loss


# -----------------------------------------------------------------------------
# Pure-JAX reference mirroring the PyTorch forward, evaluated on precomputed
# score matrices (so the only difference vs. the kernel is f32 accumulation
# order and exp/log rounding).
# -----------------------------------------------------------------------------
def supcon_ref(s, avg_dot, labels, V, K, num_classes):
  N = s.shape[0]
  cls_count = jnp.sum(jax.nn.one_hot(labels, num_classes, dtype=jnp.float32),
                      axis=0)
  lab = labels.reshape(-1, 1)
  mask = (lab == lab.T).astype(jnp.float32)
  mask = jnp.tile(mask, (V, V))
  logits = s - jnp.max(s, axis=1, keepdims=True)
  logits_mask = 1.0 - jnp.eye(N)
  mask = mask * logits_mask
  lab_rep = jnp.tile(labels, (V,))
  per_ins = cls_count[lab_rep].reshape(1, -1) - mask
  per_ins = jnp.where(per_ins < 1e-6, 1.0, per_ins)
  exp_logits = jnp.exp(logits) * logits_mask
  exp_sum = jnp.sum(exp_logits / per_ins, axis=1, keepdims=True)
  log_prob = logits - jnp.log(exp_sum)
  mpp = jnp.sum(mask, axis=1)
  mpp = jnp.where(mpp < 1e-6, 1.0, mpp)
  mean_lpp = jnp.sum(mask * log_prob, axis=1) / mpp
  loss = jnp.mean(-mean_lpp)

  onehot = jax.nn.one_hot(lab_rep, num_classes, dtype=jnp.float32)
  avg_mask = jnp.repeat(onehot, K, axis=1)
  pos = jnp.exp(avg_dot * avg_mask)
  neg = jnp.exp(avg_dot * (1.0 - avg_mask))
  avg_loss = -jnp.mean(jnp.log(pos / neg))
  return loss, avg_loss


# -----------------------------------------------------------------------------
if __name__ == "__main__":
  key = jax.random.PRNGKey(0)
  B, V, D = 8, 2, 32          # batch, views (anchor_count=2), feature dim
  C, K = 4, 4                 # num classes (= len(cls_num_list)), centroids/cls
  TEMP = 0.1

  kf, kl, ka = jax.random.split(key, 3)
  features = jax.random.normal(kf, (B, V, D), jnp.float32)
  features = features / jnp.linalg.norm(features, axis=-1, keepdims=True)
  labels = jax.random.randint(kl, (B,), 0, C)
  average = jax.random.normal(ka, (C, K, D), jnp.float32)
  average = average / jnp.linalg.norm(average, axis=-1, keepdims=True)

  loss, avg_loss = supcon_loss(features, labels, average, num_classes=C,
                               temperature=TEMP, warmup=False)
  loss_w = supcon_loss(features, labels, average, num_classes=C,
                       temperature=TEMP, warmup=True)
  # Fallback path (streaming row max, no normalization assumption).
  loss_sm, avg_sm = supcon_loss(features, labels, average, num_classes=C,
                                temperature=TEMP, warmup=False,
                                assume_normalized=False)
  jax.block_until_ready((loss, avg_loss, loss_w, loss_sm, avg_sm))

  # f32 reference evaluated at the exact bf16 operands the kernels feed the MXU
  # (rows pre-scaled by 1/temperature, cols/centroids unscaled).
  N = V * B
  anchor = jnp.transpose(features, (1, 0, 2)).reshape(N, D)
  rows_q = (anchor / TEMP).astype(jnp.bfloat16).astype(jnp.float32)
  cols_q = anchor.astype(jnp.bfloat16).astype(jnp.float32)
  avg_q = average.reshape(-1, D).astype(jnp.bfloat16).astype(jnp.float32)
  s_ref = rows_q @ cols_q.T
  avg_dot_ref = cols_q @ avg_q.T
  ref_loss, ref_avg = supcon_ref(s_ref, avg_dot_ref, labels, V, K, C)

  assert jnp.allclose(loss, ref_loss, rtol=2e-3, atol=2e-3), (loss, ref_loss)
  assert jnp.allclose(avg_loss, ref_avg, rtol=2e-3, atol=2e-3), (avg_loss, ref_avg)
  assert jnp.allclose(loss_w, loss, rtol=1e-5, atol=1e-5), (loss_w, loss)
  assert jnp.allclose(loss_sm, loss, rtol=1e-4, atol=1e-4), (loss_sm, loss)
  assert jnp.allclose(avg_sm, avg_loss, rtol=1e-5, atol=1e-5), (avg_sm, avg_loss)

  print("KERNEL_OK")
</pallas_src>

<mosaic_0001>
module attributes {stable_mosaic.version = 11 : i64} {
  func.func @_supcon_main_kernel(%arg0: i32, %arg1: i32, %arg2: memref<128x1xf32, #tpu.memory_space<vmem>>, %arg3: memref<8x128xf32, #tpu.memory_space<vmem>>, %arg4: memref<128x128xbf16, #tpu.memory_space<vmem>>, %arg5: memref<128x128xbf16, #tpu.memory_space<vmem>>, %arg6: memref<128x1xf32, #tpu.memory_space<vmem>>, %arg7: memref<128x1xf32, #tpu.memory_space<vmem>>) attributes {dimension_semantics = [#tpu.dimension_semantics<parallel>, #tpu.dimension_semantics<arbitrary>], iteration_bounds = array<i64: 1, 1>, scalar_prefetch = 0 : i64, scratch_operands = 0 : i64, tpu.core_type = #tpu.core_type<tc>, window_params = [{transform_indices = @transform_0, window_bounds = array<i64: 128, 1>}, {transform_indices = @transform_1, window_bounds = array<i64: 8, 128>}, {transform_indices = @transform_2, window_bounds = array<i64: 128, 128>}, {transform_indices = @transform_3, window_bounds = array<i64: 128, 128>}, {transform_indices = @transform_4, window_bounds = array<i64: 128, 1>}, {transform_indices = @transform_5, window_bounds = array<i64: 128, 1>}]} {
    %c0_i32 = arith.constant 0 : i32
    %0 = arith.cmpi eq, %arg1, %c0_i32 : i32
    %1 = arith.extui %0 : i1 to i32
    %c0_i32_0 = arith.constant 0 : i32
    %2 = arith.cmpi ne, %1, %c0_i32_0 : i32
    scf.if %2 {
      %cst_27 = arith.constant 0.000000e+00 : f32
      %49 = vector.broadcast %cst_27 : f32 to vector<128x1xf32>
      %c0_28 = arith.constant 0 : index
      %c0_29 = arith.constant 0 : index
      %50 = vector.load %arg6[%c0_28, %c0_29] : memref<128x1xf32, #tpu.memory_space<vmem>>, vector<128x1xf32>
      tpu.vector_store %arg6[%c0_28, %c0_29], %49 {strides = array<i32>} : memref<128x1xf32, #tpu.memory_space<vmem>>, vector<128x1xf32>,
      %cst_30 = arith.constant 0.000000e+00 : f32
      %51 = vector.broadcast %cst_30 : f32 to vector<128x1xf32>
      %c0_31 = arith.constant 0 : index
      %c0_32 = arith.constant 0 : index
      %52 = vector.load %arg7[%c0_31, %c0_32] : memref<128x1xf32, #tpu.memory_space<vmem>>, vector<128x1xf32>
      tpu.vector_store %arg7[%c0_31, %c0_32], %51 {strides = array<i32>} : memref<128x1xf32, #tpu.memory_space<vmem>>, vector<128x1xf32>,
    } else {
    }
    %c0 = arith.constant 0 : index
    %c0_1 = arith.constant 0 : index
    %3 = vector.load %arg2[%c0, %c0_1] : memref<128x1xf32, #tpu.memory_space<vmem>>, vector<128x1xf32>
    %c0_2 = arith.constant 0 : index
    %c0_3 = arith.constant 0 : index
    %4 = vector.load %arg3[%c0_2, %c0_3] : memref<8x128xf32, #tpu.memory_space<vmem>>, vector<8x128xf32>
    %5 = vector.extract_strided_slice %4 {offsets = [0, 0], sizes = [1, 128], strides = [1, 1]} : vector<8x128xf32> to vector<1x128xf32>
    %6 = vector.extract_strided_slice %4 {offsets = [1, 0], sizes = [1, 128], strides = [1, 1]} : vector<8x128xf32> to vector<1x128xf32>
    %7 = vector.extract_strided_slice %4 {offsets = [2, 0], sizes = [1, 128], strides = [1, 1]} : vector<8x128xf32> to vector<1x128xf32>
    %c0_4 = arith.constant 0 : index
    %c0_5 = arith.constant 0 : index
    %8 = vector.load %arg4[%c0_4, %c0_5] : memref<128x128xbf16, #tpu.memory_space<vmem>>, vector<128x128xbf16>
    %c0_6 = arith.constant 0 : index
    %c0_7 = arith.constant 0 : index
    %9 = vector.load %arg5[%c0_6, %c0_7] : memref<128x128xbf16, #tpu.memory_space<vmem>>, vector<128x128xbf16>
    %cst = arith.constant dense<0.000000e+00> : vector<128x128xf32>
    %10 = tpu.matmul %8, %9, %cst {dimension_numbers = #tpu.dot_dimension_numbers<[1], [1], [0], [0], [0, 0, 1, 0], [], []>} : vector<128x128xbf16>, vector<128x128xbf16>, vector<128x128xf32> -> vector<128x128xf32>
    %11 = vector.broadcast %3 : vector<128x1xf32> to vector<128x128xf32>
    %12 = vector.broadcast %5 : vector<1x128xf32> to vector<128x128xf32>
    %13 = arith.cmpf oeq, %11, %12 : vector<128x128xf32>
    %14 = vector.shape_cast %7 : vector<1x128xf32> to vector<1x128xf32>
    %15 = vector.broadcast %14 : vector<1x128xf32> to vector<128x128xf32>
    %16 = vector.shape_cast %6 : vector<1x128xf32> to vector<1x128xf32>
    %17 = vector.broadcast %16 : vector<1x128xf32> to vector<128x128xf32>
    %18 = arith.select %13, %15, %17 : vector<128x128xi1>, vector<128x128xf32>
    %cst_8 = arith.constant 0.000000e+00 : f32
    %19 = vector.broadcast %cst_8 : f32 to vector<128x128xf32>
    %20 = arith.select %13, %10, %19 : vector<128x128xi1>, vector<128x128xf32>
    %cst_9 = arith.constant 1.000000e+01 : f32
    %21 = vector.broadcast %cst_9 : f32 to vector<128x128xf32>
    %22 = arith.subf %10, %21 : vector<128x128xf32>
    %23 = math.exp %22 : vector<128x128xf32>
    %c0_10 = arith.constant 0 : index
    %c0_11 = arith.constant 0 : index
    %24 = vector.load %arg7[%c0_10, %c0_11] : memref<128x1xf32, #tpu.memory_space<vmem>>, vector<128x1xf32>
    %25 = arith.mulf %23, %18 : vector<128x128xf32>
    %cst_12 = arith.constant dense<0.000000e+00> : vector<128xf32>
    %26 = vector.multi_reduction <add>, %25, %cst_12 [1] : vector<128x128xf32> to vector<128xf32>
    %27 = vector.shape_cast %26 : vector<128xf32> to vector<128x1xf32>
    %28 = arith.addf %24, %27 : vector<128x1xf32>
    %c0_13 = arith.constant 0 : index
    %c0_14 = arith.constant 0 : index
    %29 = vector.load %arg7[%c0_13, %c0_14] : memref<128x1xf32, #tpu.memory_space<vmem>>, vector<128x1xf32>
    tpu.vector_store %arg7[%c0_13, %c0_14], %28 {strides = array<i32>} : memref<128x1xf32, #tpu.memory_space<vmem>>, vector<128x1xf32>,
    %c0_15 = arith.constant 0 : index
    %c0_16 = arith.constant 0 : index
    %30 = vector.load %arg6[%c0_15, %c0_16] : memref<128x1xf32, #tpu.memory_space<vmem>>, vector<128x1xf32>
    %cst_17 = arith.constant dense<0.000000e+00> : vector<128xf32>
    %31 = vector.multi_reduction <add>, %20, %cst_17 [1] : vector<128x128xf32> to vector<128xf32>
    %32 = vector.shape_cast %31 : vector<128xf32> to vector<128x1xf32>
    %33 = arith.addf %30, %32 : vector<128x1xf32>
    %c0_18 = arith.constant 0 : index
    %c0_19 = arith.constant 0 : index
    %34 = vector.load %arg6[%c0_18, %c0_19] : memref<128x1xf32, #tpu.memory_space<vmem>>, vector<128x1xf32>
    tpu.vector_store %arg6[%c0_18, %c0_19], %33 {strides = array<i32>} : memref<128x1xf32, #tpu.memory_space<vmem>>, vector<128x1xf32>,
    %c128_i32 = arith.constant 128 : i32
    %35 = arith.muli %arg0, %c128_i32 : i32
    %c1_i32 = arith.constant 1 : i32
    %36 = arith.addi %arg1, %c1_i32 : i32
    %c128_i32_20 = arith.constant 128 : i32
    %37 = arith.muli %36, %c128_i32_20 : i32
    %38 = arith.cmpi slt, %35, %37 : i32
    %c128_i32_21 = arith.constant 128 : i32
    %39 = arith.muli %arg1, %c128_i32_21 : i32
    %c1_i32_22 = arith.constant 1 : i32
    %40 = arith.addi %arg0, %c1_i32_22 : i32
    %c128_i32_23 = arith.constant 128 : i32
    %41 = arith.muli %40, %c128_i32_23 : i32
    %42 = arith.cmpi slt, %39, %41 : i32
    %43 = arith.andi %38, %42 : i1
    %44 = arith.extui %43 : i1 to i32
    %c0_i32_24 = arith.constant 0 : i32
    %45 = arith.cmpi ne, %44, %c0_i32_24 : i32
    scf.if %45 {
      %c128_i32_27 = arith.constant 128 : i32
      %49 = arith.muli %arg0, %c128_i32_27 : i32
      %50 = tpu.iota {dimensions = array<i32: 0>} : vector<128x1xi32>
      %51 = vector.broadcast %49 : i32 to vector<128x1xi32>
      %52 = arith.addi %51, %50 : vector<128x1xi32>
      %c128_i32_28 = arith.constant 128 : i32
      %53 = arith.muli %arg1, %c128_i32_28 : i32
      %54 = tpu.iota {dimensions = array<i32: 1>} : vector<1x128xi32>
      %55 = vector.broadcast %53 : i32 to vector<1x128xi32>
      %56 = arith.addi %55, %54 : vector<1x128xi32>
      %57 = vector.broadcast %52 : vector<128x1xi32> to vector<128x128xi32>
      %58 = vector.broadcast %56 : vector<1x128xi32> to vector<128x128xi32>
      %59 = arith.cmpi eq, %57, %58 : vector<128x128xi32>
      %c0_29 = arith.constant 0 : index
      %c0_30 = arith.constant 0 : index
      %60 = vector.load %arg7[%c0_29, %c0_30] : memref<128x1xf32, #tpu.memory_space<vmem>>, vector<128x1xf32>
      %61 = vector.broadcast %7 : vector<1x128xf32> to vector<128x128xf32>
      %62 = arith.mulf %23, %61 : vector<128x128xf32>
      %cst_31 = arith.constant 0.000000e+00 : f32
      %63 = vector.broadcast %cst_31 : f32 to vector<128x128xf32>
      %64 = arith.select %59, %62, %63 : vector<128x128xi1>, vector<128x128xf32>
      %cst_32 = arith.constant dense<0.000000e+00> : vector<128xf32>
      %65 = vector.multi_reduction <add>, %64, %cst_32 [1] : vector<128x128xf32> to vector<128xf32>
      %66 = vector.shape_cast %65 : vector<128xf32> to vector<128x1xf32>
      %67 = arith.subf %60, %66 : vector<128x1xf32>
      %c0_33 = arith.constant 0 : index
      %c0_34 = arith.constant 0 : index
      %68 = vector.load %arg7[%c0_33, %c0_34] : memref<128x1xf32, #tpu.memory_space<vmem>>, vector<128x1xf32>
      tpu.vector_store %arg7[%c0_33, %c0_34], %67 {strides = array<i32>} : memref<128x1xf32, #tpu.memory_space<vmem>>, vector<128x1xf32>,
      %c0_35 = arith.constant 0 : index
      %c0_36 = arith.constant 0 : index
      %69 = vector.load %arg6[%c0_35, %c0_36] : memref<128x1xf32, #tpu.memory_space<vmem>>, vector<128x1xf32>
      %cst_37 = arith.constant 0.000000e+00 : f32
      %70 = vector.broadcast %cst_37 : f32 to vector<128x128xf32>
      %71 = arith.select %59, %10, %70 : vector<128x128xi1>, vector<128x128xf32>
      %cst_38 = arith.constant dense<0.000000e+00> : vector<128xf32>
      %72 = vector.multi_reduction <add>, %71, %cst_38 [1] : vector<128x128xf32> to vector<128xf32>
      %73 = vector.shape_cast %72 : vector<128xf32> to vector<128x1xf32>
      %74 = arith.subf %69, %73 : vector<128x1xf32>
      %c0_39 = arith.constant 0 : index
      %c0_40 = arith.constant 0 : index
      %75 = vector.load %arg6[%c0_39, %c0_40] : memref<128x1xf32, #tpu.memory_space<vmem>>, vector<128x1xf32>
      tpu.vector_store %arg6[%c0_39, %c0_40], %74 {strides = array<i32>} : memref<128x1xf32, #tpu.memory_space<vmem>>, vector<128x1xf32>,
    } else {
    }
    %c0_i32_25 = arith.constant 0 : i32
    %46 = arith.cmpi eq, %arg1, %c0_i32_25 : i32
    %47 = arith.extui %46 : i1 to i32
    %c0_i32_26 = arith.constant 0 : i32
    %48 = arith.cmpi ne, %47, %c0_i32_26 : i32
    scf.if %48 {
      %c0_27 = arith.constant 0 : index
      %c0_28 = arith.constant 0 : index
      %49 = vector.load %arg7[%c0_27, %c0_28] : memref<128x1xf32, #tpu.memory_space<vmem>>, vector<128x1xf32>
      %50 = math.log %49 : vector<128x1xf32>
      %cst_29 = arith.constant 1.000000e+01 : f32
      %51 = vector.broadcast %cst_29 : f32 to vector<128x1xf32>
      %52 = arith.addf %51, %50 : vector<128x1xf32>
      %c0_30 = arith.constant 0 : index
      %c0_31 = arith.constant 0 : index
      %53 = vector.load %arg7[%c0_30, %c0_31] : memref<128x1xf32, #tpu.memory_space<vmem>>, vector<128x1xf32>
      tpu.vector_store %arg7[%c0_30, %c0_31], %52 {strides = array<i32>} : memref<128x1xf32, #tpu.memory_space<vmem>>, vector<128x1xf32>,
    } else {
    }
    return
  }
  func.func @transform_0(%arg0: i32, %arg1: i32) -> (i32, i32) {
    %c0_i32 = arith.constant 0 : i32
    %c0_i32_0 = arith.constant 0 : i32
    return %arg0, %c0_i32 : i32, i32
  }
  func.func @transform_1(%arg0: i32, %arg1: i32) -> (i32, i32) {
    %c0_i32 = arith.constant 0 : i32
    %c0_i32_0 = arith.constant 0 : i32
    return %c0_i32, %arg1 : i32, i32
  }
  func.func @transform_2(%arg0: i32, %arg1: i32) -> (i32, i32) {
    %c0_i32 = arith.constant 0 : i32
    %c0_i32_0 = arith.constant 0 : i32
    return %arg0, %c0_i32 : i32, i32
  }
  func.func @transform_3(%arg0: i32, %arg1: i32) -> (i32, i32) {
    %c0_i32 = arith.constant 0 : i32
    %c0_i32_0 = arith.constant 0 : i32
    return %arg1, %c0_i32 : i32, i32
  }
  func.func @transform_4(%arg0: i32, %arg1: i32) -> (i32, i32) {
    %c0_i32 = arith.constant 0 : i32
    %c0_i32_0 = arith.constant 0 : i32
    return %arg0, %c0_i32 : i32, i32
  }
  func.func @transform_5(%arg0: i32, %arg1: i32) -> (i32, i32) {
    %c0_i32 = arith.constant 0 : i32
    %c0_i32_0 = arith.constant 0 : i32
    return %arg0, %c0_i32 : i32, i32
  }
}

</mosaic_0001>

<llo_original>
// kernel: tpu_custom_call.1
$region0: #{tpu_custom_call.1}
  #allocation0 [shape = 'u32[]', space=smem, size = 0x4, offset = 0x4, fixed_abs, tag = 'smem constant byte address 0x4 - core index']
  #allocation1 [shape = 'u32[144,128]{1,0:T(1,128)}', space=vmem, size = 0x12000, scoped, tag = 'internal scratch']
  %s0 = inlined_call_operand.vmem [shape: f32[128,1], index: 0, kind: input, shape index: {}]
  %s1 = inlined_call_operand.hbm [shape: f32[8,128], index: 1, kind: input, shape index: {}]
  %s2 = inlined_call_operand.vmem [shape: bf16[128,128], index: 2, kind: input, shape index: {}]
  %s3 = inlined_call_operand.vmem [shape: bf16[128,128], index: 3, kind: input, shape index: {}]
  %s4 = inlined_call_operand.vmem [shape: f32[128,1], index: 4, kind: output, shape index: {0}]
  %s5 = inlined_call_operand.vmem [shape: f32[128,1], index: 5, kind: output, shape index: {1}]
  %6 = xla_tuple %s4, %s5
  %s7 = sld [smem:[#allocation0]]
  $region50: #{tpu_custom_call.1} parent=0
    _
  %s9 = ssub.s32 1, %s7
  %s10 = scalar_select 0, %s9, %s7
  $region1: #{tpu_custom_call.1} parent=0
    #allocation2 [shape = 'u8[4096]{0}', space=vmem, size = 0x1000, scoped, tag = 'input window, operand 1, single buffered']
    #allocation3 [shape = 's32[1]{0}', space=sflag, size = 0x4, scoped, tag = 'scoped memory for tpu_custom_call.1']
    %11 = vsyncpa [#allocation3], 0
    // Predicated region
    $region2: #{tpu_custom_call.1} parent=1 // pred_check
      _
    $region3: #{tpu_custom_call.1} parent=1 // pred_check_branch
      %13 = sbr.rel (0) target = $region5
    $region4: #{tpu_custom_call.1} parent=1 // pred_region
      _
    $region5: #{tpu_custom_call.1} parent=1 // pred_fallthru
      _
    // Predicated region
    $region6: #{tpu_custom_call.1} parent=1 // pred_check
      _
    $region7: #{tpu_custom_call.1} parent=1 // pred_check_branch
      %15 = sbr.rel (0) target = $region9
    $region8: #{tpu_custom_call.1} parent=1 // pred_region
      %s17 = ssub.s32 128, 128
      %18 = vsyncadd [#allocation3], %s17
      %s20 = sshll.u32 [#allocation2], 4
      %s21 = int_to_ptr.vmem [resolvable:$true] %s20
      %23 = dma.hbm_to_vmem [thread:$0]  %s1, 128, %s21, [#allocation3]
    $region9: #{tpu_custom_call.1} parent=1 // pred_fallthru
      _
    // Predicated region
    $region10: #{tpu_custom_call.1} parent=1 // pred_check
      _
    $region11: #{tpu_custom_call.1} parent=1 // pred_check_branch
      %25 = sbr.rel (0) target = $region13
    $region12: #{tpu_custom_call.1} parent=1 // pred_region
      _
    $region13: #{tpu_custom_call.1} parent=1 // pred_fallthru
      _
    // Predicated region
    $region14: #{tpu_custom_call.1} parent=1 // pred_check
      _
    $region15: #{tpu_custom_call.1} parent=1 // pred_check_branch
      %27 = sbr.rel (0) target = $region17
    $region16: #{tpu_custom_call.1} parent=1 // pred_region
      _
    $region17: #{tpu_custom_call.1} parent=1 // pred_fallthru
      _
    // Predicated region
    $region18: #{tpu_custom_call.1} parent=1 // pred_check
      _
    $region19: #{tpu_custom_call.1} parent=1 // pred_check_branch
      %29 = sbr.rel (0) target = $region21
    $region20: #{tpu_custom_call.1} parent=1 // pred_region
      %30 = dma.done [#allocation3], 128
    $region21: #{tpu_custom_call.1} parent=1 // pred_fallthru
      _
    %p32 = scmp.eq.s32.totalorder 0, 0
    // Predicated region
    $region22: #{tpu_custom_call.1} parent=1 // pred_check
      %p33 = pneg %p32
    $region23: #{tpu_custom_call.1} parent=1 // pred_check_branch
      %35 = sbr.rel (%p33) target = $region25
    $region24: #{tpu_custom_call.1} parent=1 // pred_region
      %vm36 = vcmask 7168
      %37 = vst.msk [vmem:[%s4] sm:$0xff] %vm36, 0.0
      %38 = vst.msk [vmem:[%s4 + $0x8] sm:$0xff] %vm36, 0.0
      %39 = vst.msk [vmem:[%s4 + $0x10] sm:$0xff] %vm36, 0.0
      %40 = vst.msk [vmem:[%s4 + $0x18] sm:$0xff] %vm36, 0.0
      %41 = vst.msk [vmem:[%s4 + $0x20] sm:$0xff] %vm36, 0.0
      %42 = vst.msk [vmem:[%s4 + $0x28] sm:$0xff] %vm36, 0.0
      %43 = vst.msk [vmem:[%s4 + $0x30] sm:$0xff] %vm36, 0.0
      %44 = vst.msk [vmem:[%s4 + $0x38] sm:$0xff] %vm36, 0.0
      %45 = vst.msk [vmem:[%s4 + $0x40] sm:$0xff] %vm36, 0.0
      %46 = vst.msk [vmem:[%s4 + $0x48] sm:$0xff] %vm36, 0.0
      %47 = vst.msk [vmem:[%s4 + $0x50] sm:$0xff] %vm36, 0.0
      %48 = vst.msk [vmem:[%s4 + $0x58] sm:$0xff] %vm36, 0.0
      %49 = vst.msk [vmem:[%s4 + $0x60] sm:$0xff] %vm36, 0.0
      %50 = vst.msk [vmem:[%s4 + $0x68] sm:$0xff] %vm36, 0.0
      %51 = vst.msk [vmem:[%s4 + $0x70] sm:$0xff] %vm36, 0.0
      %52 = vst.msk [vmem:[%s4 + $0x78] sm:$0xff] %vm36, 0.0
      %53 = vst.msk [vmem:[%s5] sm:$0xff] %vm36, 0.0
      %54 = vst.msk [vmem:[%s5 + $0x8] sm:$0xff] %vm36, 0.0
      %55 = vst.msk [vmem:[%s5 + $0x10] sm:$0xff] %vm36, 0.0
      %56 = vst.msk [vmem:[%s5 + $0x18] sm:$0xff] %vm36, 0.0
      %57 = vst.msk [vmem:[%s5 + $0x20] sm:$0xff] %vm36, 0.0
      %58 = vst.msk [vmem:[%s5 + $0x28] sm:$0xff] %vm36, 0.0
      %59 = vst.msk [vmem:[%s5 + $0x30] sm:$0xff] %vm36, 0.0
      %60 = vst.msk [vmem:[%s5 + $0x38] sm:$0xff] %vm36, 0.0
      %61 = vst.msk [vmem:[%s5 + $0x40] sm:$0xff] %vm36, 0.0
      %62 = vst.msk [vmem:[%s5 + $0x48] sm:$0xff] %vm36, 0.0
      %63 = vst.msk [vmem:[%s5 + $0x50] sm:$0xff] %vm36, 0.0
      %64 = vst.msk [vmem:[%s5 + $0x58] sm:$0xff] %vm36, 0.0
      %65 = vst.msk [vmem:[%s5 + $0x60] sm:$0xff] %vm36, 0.0
      %66 = vst.msk [vmem:[%s5 + $0x68] sm:$0xff] %vm36, 0.0
      %67 = vst.msk [vmem:[%s5 + $0x70] sm:$0xff] %vm36, 0.0
      %68 = vst.msk [vmem:[%s5 + $0x78] sm:$0xff] %vm36, 0.0
    $region25: #{tpu_custom_call.1} parent=1 // pred_fallthru
      _
    %v69 = vld [vmem:[%s0] sm:$0xff]
    %v70 = vld [vmem:[%s0 + $0x8] sm:$0xff]
    %v71 = vld [vmem:[%s0 + $0x10] sm:$0xff]
    %v72 = vld [vmem:[%s0 + $0x18] sm:$0xff]
    %v73 = vld [vmem:[%s0 + $0x20] sm:$0xff]
    %v74 = vld [vmem:[%s0 + $0x28] sm:$0xff]
    %v75 = vld [vmem:[%s0 + $0x30] sm:$0xff]
    %v76 = vld [vmem:[%s0 + $0x38] sm:$0xff]
    %v77 = vld [vmem:[%s0 + $0x40] sm:$0xff]
    %v78 = vld [vmem:[%s0 + $0x48] sm:$0xff]
    %v79 = vld [vmem:[%s0 + $0x50] sm:$0xff]
    %v80 = vld [vmem:[%s0 + $0x58] sm:$0xff]
    %v81 = vld [vmem:[%s0 + $0x60] sm:$0xff]
    %v82 = vld [vmem:[%s0 + $0x68] sm:$0xff]
    %v83 = vld [vmem:[%s0 + $0x70] sm:$0xff]
    %v84 = vld [vmem:[%s0 + $0x78] sm:$0xff]
    %v85 = vld [vmem:[#allocation2] sm:$0xff]
    %v86 = vld [vmem:[%s2] sm:$0xf]
    %v87 = vld [vmem:[%s2 + $0x4] sm:$0xf]
    %v88 = vld [vmem:[%s2 + $0x8] sm:$0xf]
    %v89 = vld [vmem:[%s2 + $0xc] sm:$0xf]
    %v90 = vld [vmem:[%s2 + $0x10] sm:$0xf]
    %v91 = vld [vmem:[%s2 + $0x14] sm:$0xf]
    %v92 = vld [vmem:[%s2 + $0x18] sm:$0xf]
    %v93 = vld [vmem:[%s2 + $0x1c] sm:$0xf]
    %v94 = vld [vmem:[%s2 + $0x20] sm:$0xf]
    %v95 = vld [vmem:[%s2 + $0x24] sm:$0xf]
    %v96 = vld [vmem:[%s2 + $0x28] sm:$0xf]
    %v97 = vld [vmem:[%s2 + $0x2c] sm:$0xf]
    %v98 = vld [vmem:[%s2 + $0x30] sm:$0xf]
    %v99 = vld [vmem:[%s2 + $0x34] sm:$0xf]
    %v100 = vld [vmem:[%s2 + $0x38] sm:$0xf]
    %v101 = vld [vmem:[%s2 + $0x3c] sm:$0xf]
    %v102 = vld [vmem:[%s3] sm:$0xf]
    %v103 = vld [vmem:[%s3 + $0x4] sm:$0xf]
    %v104 = vld [vmem:[%s3 + $0x8] sm:$0xf]
    %v105 = vld [vmem:[%s3 + $0xc] sm:$0xf]
    %v106 = vld [vmem:[%s3 + $0x10] sm:$0xf]
    %v107 = vld [vmem:[%s3 + $0x14] sm:$0xf]
    %v108 = vld [vmem:[%s3 + $0x18] sm:$0xf]
    %v109 = vld [vmem:[%s3 + $0x1c] sm:$0xf]
    %v110 = vld [vmem:[%s3 + $0x20] sm:$0xf]
    %v111 = vld [vmem:[%s3 + $0x24] sm:$0xf]
    %v112 = vld [vmem:[%s3 + $0x28] sm:$0xf]
    %v113 = vld [vmem:[%s3 + $0x2c] sm:$0xf]
    %v114 = vld [vmem:[%s3 + $0x30] sm:$0xf]
    %v115 = vld [vmem:[%s3 + $0x34] sm:$0xf]
    %v116 = vld [vmem:[%s3 + $0x38] sm:$0xf]
    %v117 = vld [vmem:[%s3 + $0x3c] sm:$0xf]
    %v134 = vunpack.c.l.b16 %v86
    %v135 = vunpack.c.l.b16 %v87
    %v136 = vunpack.c.l.b16 %v88
    %v137 = vunpack.c.l.b16 %v89
    %v138 = vunpack.c.l.b16 %v90
    %v139 = vunpack.c.l.b16 %v91
    %v140 = vunpack.c.l.b16 %v92
    %v141 = vunpack.c.l.b16 %v93
    %v142 = vunpack.c.l.b16 %v94
    %v143 = vunpack.c.l.b16 %v95
    %v144 = vunpack.c.l.b16 %v96
    %v145 = vunpack.c.l.b16 %v97
    %v146 = vunpack.c.l.b16 %v98
    %v147 = vunpack.c.l.b16 %v99
    %v148 = vunpack.c.l.b16 %v100
    %v149 = vunpack.c.l.b16 %v101
    %v150 = vpack.c.b16 %v135, %v134
    %v151 = vpack.c.b16 %v137, %v136
    %v152 = vpack.c.b16 %v139, %v138
    %v153 = vpack.c.b16 %v141, %v140
    %v154 = vpack.c.b16 %v143, %v142
    %v155 = vpack.c.b16 %v145, %v144
    %v156 = vpack.c.b16 %v147, %v146
    %v157 = vpack.c.b16 %v149, %v148
    %v182 = vunpack.c.l.b16 %v102
    %v183 = vunpack.c.l.b16 %v103
    %v184 = vunpack.c.l.b16 %v104
    %v185 = vunpack.c.l.b16 %v105
    %v186 = vunpack.c.l.b16 %v106
    %v187 = vunpack.c.l.b16 %v107
    %v188 = vunpack.c.l.b16 %v108
    %v189 = vunpack.c.l.b16 %v109
    %v190 = vunpack.c.l.b16 %v110
    %v191 = vunpack.c.l.b16 %v111
    %v192 = vunpack.c.l.b16 %v112
    %v193 = vunpack.c.l.b16 %v113
    %v194 = vunpack.c.l.b16 %v114
    %v195 = vunpack.c.l.b16 %v115
    %v196 = vunpack.c.l.b16 %v116
    %v197 = vunpack.c.l.b16 %v117
    %v198 = vpack.c.b16 %v183, %v182
    %v199 = vpack.c.b16 %v185, %v184
    %v200 = vpack.c.b16 %v187, %v186
    %v201 = vpack.c.b16 %v189, %v188
    %v202 = vpack.c.b16 %v191, %v190
    %v203 = vpack.c.b16 %v193, %v192
    %v204 = vpack.c.b16 %v195, %v194
    %v205 = vpack.c.b16 %v197, %v196
    %214 = vmatprep.subr.bf16.mxu0 0
    %215 = vmatpush1.bf16.xpose.msra.mxu0 %v198
    %216 = vmatprep.subr.bf16.mxu0 0
    %217 = vmatpush1.bf16.xpose.msra.mxu0 %v199
    %218 = vmatprep.subr.bf16.mxu0 0
    %219 = vmatpush1.bf16.xpose.msra.mxu0 %v200
    %220 = vmatprep.subr.bf16.mxu0 0
    %221 = vmatpush1.bf16.xpose.msra.mxu0 %v201
    %222 = vmatprep.subr.bf16.mxu0 0
    %223 = vmatpush1.bf16.xpose.msra.mxu0 %v202
    %224 = vmatprep.subr.bf16.mxu0 0
    %225 = vmatpush1.bf16.xpose.msra.mxu0 %v203
    %226 = vmatprep.subr.bf16.mxu0 0
    %227 = vmatpush1.bf16.xpose.msra.mxu0 %v204
    %228 = vmatprep.subr.bf16.mxu0 0
    %229 = vmatpush1.bf16.xpose.msra.mxu0 %v205
    %230 = vmatprep.subr.bf16.mxu0 0
    %231 = vmatpush1.bf16.xpose.msra.mxu0 0
    %232 = vmatprep.subr.bf16.mxu0 0
    %233 = vmatpush1.bf16.xpose.msra.mxu0 0
    %234 = vmatprep.subr.bf16.mxu0 0
    %235 = vmatpush1.bf16.xpose.msra.mxu0 0
    %236 = vmatprep.subr.bf16.mxu0 0
    %237 = vmatpush1.bf16.xpose.msra.mxu0 0
    %238 = vmatprep.subr.bf16.mxu0 0
    %239 = vmatpush1.bf16.xpose.msra.mxu0 0
    %240 = vmatprep.subr.bf16.mxu0 0
    %241 = vmatpush1.bf16.xpose.msra.mxu0 0
    %242 = vmatprep.subr.bf16.mxu0 0
    %243 = vmatpush1.bf16.xpose.msra.mxu0 0
    %244 = vmatprep.subr.bf16.mxu0 0
    %245 = vmatpush1.bf16.xpose.msra.mxu0 0
    %246 = vmatprep.mubr.bf16.mxu0 0
    %247 = vmatmul.mubr.bf16.gmra.mrb[0].mxu0 %v150
    %v248 = vpop.f32.mrb[0].mxu0
    %v249 = vadd.f32 0.0, %v248
    %v250 = vpop.f32.mrb[0].mxu0
    %v251 = vpop.f32.mrb[0].mxu0
    %v252 = vadd.f32 0.0, %v251
    %v253 = vpop.f32.mrb[0].mxu0
    %254 = vmatprep.mubr.bf16.mxu0 0
    %255 = vmatmul.mubr.bf16.gmra.mrb[0].mxu0 %v151
    %v256 = vpop.f32.mrb[0].mxu0
    %v257 = vadd.f32 0.0, %v256
    %v258 = vpop.f32.mrb[0].mxu0
    %v259 = vpop.f32.mrb[0].mxu0
    %v260 = vadd.f32 0.0, %v259
    %v261 = vpop.f32.mrb[0].mxu0
    %262 = vmatprep.mubr.bf16.mxu0 0
    %263 = vmatmul.mubr.bf16.gmra.mrb[0].mxu0 %v152
    %v264 = vpop.f32.mrb[0].mxu0
    %v265 = vadd.f32 0.0, %v264
    %v266 = vpop.f32.mrb[0].mxu0
    %v267 = vpop.f32.mrb[0].mxu0
    %v268 = vadd.f32 0.0, %v267
    %v269 = vpop.f32.mrb[0].mxu0
    %270 = vmatprep.mubr.bf16.mxu0 0
    %271 = vmatmul.mubr.bf16.gmra.mrb[0].mxu0 %v153
    %v272 = vpop.f32.mrb[0].mxu0
    %v273 = vadd.f32 0.0, %v272
    %v274 = vpop.f32.mrb[0].mxu0
    %v275 = vpop.f32.mrb[0].mxu0
    %v276 = vadd.f32 0.0, %v275
    %v277 = vpop.f32.mrb[0].mxu0
    %278 = vmatprep.mubr.bf16.mxu0 0
    %279 = vmatmul.mubr.bf16.gmra.mrb[0].mxu0 %v154
    %v280 = vpop.f32.mrb[0].mxu0
    %v281 = vadd.f32 0.0, %v280
    %v282 = vpop.f32.mrb[0].mxu0
    %v283 = vpop.f32.mrb[0].mxu0
    %v284 = vadd.f32 0.0, %v283
    %v285 = vpop.f32.mrb[0].mxu0
    %286 = vmatprep.mubr.bf16.mxu0 0
    %287 = vmatmul.mubr.bf16.gmra.mrb[0].mxu0 %v155
    %v288 = vpop.f32.mrb[0].mxu0
    %v289 = vadd.f32 0.0, %v288
    %v290 = vpop.f32.mrb[0].mxu0
    %v291 = vpop.f32.mrb[0].mxu0
    %v292 = vadd.f32 0.0, %v291
    %v293 = vpop.f32.mrb[0].mxu0
    %294 = vmatprep.mubr.bf16.mxu0 0
    %295 = vmatmul.mubr.bf16.gmra.mrb[0].mxu0 %v156
    %v296 = vpop.f32.mrb[0].mxu0
    %v297 = vadd.f32 0.0, %v296
    %v298 = vpop.f32.mrb[0].mxu0
    %v299 = vpop.f32.mrb[0].mxu0
    %v300 = vadd.f32 0.0, %v299
    %v301 = vpop.f32.mrb[0].mxu0
    %302 = vmatprep.mubr.bf16.mxu0 0
    %303 = vmatmul.mubr.bf16.gmra.mrb[0].mxu0 %v157
    %v304 = vpop.f32.mrb[0].mxu0
    %v305 = vadd.f32 0.0, %v304
    %v306 = vpop.f32.mrb[0].mxu0
    %v307 = vpop.f32.mrb[0].mxu0
    %v308 = vadd.f32 0.0, %v307
    %v309 = vpop.f32.mrb[0].mxu0
    %310 = vdwg.mxu0
    %312 = vset.pattern.permute.xlu0 0
    %313 = vperm.xlu0 %312, %v69
    %v314 = vpop.permute.xlu0 %313
    %317 = vset.pattern.permute.xlu0 0
    %318 = vperm.xlu0 %317, %v70
    %v319 = vpop.permute.xlu0 %318
    %322 = vset.pattern.permute.xlu0 0
    %323 = vperm.xlu0 %322, %v71
    %v324 = vpop.permute.xlu0 %323
    %327 = vset.pattern.permute.xlu0 0
    %328 = vperm.xlu0 %327, %v72
    %v329 = vpop.permute.xlu0 %328
    %332 = vset.pattern.permute.xlu0 0
    %333 = vperm.xlu0 %332, %v73
    %v334 = vpop.permute.xlu0 %333
    %337 = vset.pattern.permute.xlu0 0
    %338 = vperm.xlu0 %337, %v74
    %v339 = vpop.permute.xlu0 %338
    %342 = vset.pattern.permute.xlu0 0
    %343 = vperm.xlu0 %342, %v75
    %v344 = vpop.permute.xlu0 %343
    %347 = vset.pattern.permute.xlu0 0
    %348 = vperm.xlu0 %347, %v76
    %v349 = vpop.permute.xlu0 %348
    %352 = vset.pattern.permute.xlu0 0
    %353 = vperm.xlu0 %352, %v77
    %v354 = vpop.permute.xlu0 %353
    %357 = vset.pattern.permute.xlu0 0
    %358 = vperm.xlu0 %357, %v78
    %v359 = vpop.permute.xlu0 %358
    %362 = vset.pattern.permute.xlu0 0
    %363 = vperm.xlu0 %362, %v79
    %v364 = vpop.permute.xlu0 %363
    %367 = vset.pattern.permute.xlu0 0
    %368 = vperm.xlu0 %367, %v80
    %v369 = vpop.permute.xlu0 %368
    %372 = vset.pattern.permute.xlu0 0
    %373 = vperm.xlu0 %372, %v81
    %v374 = vpop.permute.xlu0 %373
    %377 = vset.pattern.permute.xlu0 0
    %378 = vperm.xlu0 %377, %v82
    %v379 = vpop.permute.xlu0 %378
    %382 = vset.pattern.permute.xlu0 0
    %383 = vperm.xlu0 %382, %v83
    %v384 = vpop.permute.xlu0 %383
    %387 = vset.pattern.permute.xlu0 0
    %388 = vperm.xlu0 %387, %v84
    %v389 = vpop.permute.xlu0 %388
    %v391 = vlaneseq
    %v392 = vshrl.u32 %v391, 7
    %v393 = vsub.s32 0, %v392
    %v394 = vrot.slane %v85, %v393
    %vm395 = vcmp.eq.f32.partialorder %v314, %v394
    %vm396 = vcmp.eq.f32.partialorder %v319, %v394
    %vm397 = vcmp.eq.f32.partialorder %v324, %v394
    %vm398 = vcmp.eq.f32.partialorder %v329, %v394
    %vm399 = vcmp.eq.f32.partialorder %v334, %v394
    %vm400 = vcmp.eq.f32.partialorder %v339, %v394
    %vm401 = vcmp.eq.f32.partialorder %v344, %v394
    %vm402 = vcmp.eq.f32.partialorder %v349, %v394
    %vm403 = vcmp.eq.f32.partialorder %v354, %v394
    %vm404 = vcmp.eq.f32.partialorder %v359, %v394
    %vm405 = vcmp.eq.f32.partialorder %v364, %v394
    %vm406 = vcmp.eq.f32.partialorder %v369, %v394
    %vm407 = vcmp.eq.f32.partialorder %v374, %v394
    %vm408 = vcmp.eq.f32.partialorder %v379, %v394
    %vm409 = vcmp.eq.f32.partialorder %v384, %v394
    %vm410 = vcmp.eq.f32.partialorder %v389, %v394
    %v411 = vlaneseq
    %v412 = vshrl.u32 %v411, 7
    %v413 = vsub.s32 2, %v412
    %v414 = vrot.slane %v85, %v413
    %v415 = vlaneseq
    %v416 = vshrl.u32 %v415, 7
    %v417 = vsub.s32 1, %v416
    %v418 = vrot.slane %v85, %v417
    %v419 = vsel %vm395, %v414, %v418
    %v420 = vsel %vm396, %v414, %v418
    %v421 = vsel %vm397, %v414, %v418
    %v422 = vsel %vm398, %v414, %v418
    %v423 = vsel %vm399, %v414, %v418
    %v424 = vsel %vm400, %v414, %v418
    %v425 = vsel %vm401, %v414, %v418
    %v426 = vsel %vm402, %v414, %v418
    %v427 = vsel %vm403, %v414, %v418
    %v428 = vsel %vm404, %v414, %v418
    %v429 = vsel %vm405, %v414, %v418
    %v430 = vsel %vm406, %v414, %v418
    %v431 = vsel %vm407, %v414, %v418
    %v432 = vsel %vm408, %v414, %v418
    %v433 = vsel %vm409, %v414, %v418
    %v434 = vsel %vm410, %v414, %v418
    %v435 = vsel %vm395, %v249, 0.0
    %v436 = vsel %vm396, %v252, 0.0
    %v437 = vsel %vm397, %v257, 0.0
    %v438 = vsel %vm398, %v260, 0.0
    %v439 = vsel %vm399, %v265, 0.0
    %v440 = vsel %vm400, %v268, 0.0
    %v441 = vsel %vm401, %v273, 0.0
    %v442 = vsel %vm402, %v276, 0.0
    %v443 = vsel %vm403, %v281, 0.0
    %v444 = vsel %vm404, %v284, 0.0
    %v445 = vsel %vm405, %v289, 0.0
    %v446 = vsel %vm406, %v292, 0.0
    %v447 = vsel %vm407, %v297, 0.0
    %v448 = vsel %vm408, %v300, 0.0
    %v449 = vsel %vm409, %v305, 0.0
    %v450 = vsel %vm410, %v308, 0.0
    %v451 = vsub.f32 %v249, 10.0
    %v452 = vsub.f32 %v252, 10.0
    %v453 = vsub.f32 %v257, 10.0
    %v454 = vsub.f32 %v260, 10.0
    %v455 = vsub.f32 %v265, 10.0
    %v456 = vsub.f32 %v268, 10.0
    %v457 = vsub.f32 %v273, 10.0
    %v458 = vsub.f32 %v276, 10.0
    %v459 = vsub.f32 %v281, 10.0
    %v460 = vsub.f32 %v284, 10.0
    %v461 = vsub.f32 %v289, 10.0
    %v462 = vsub.f32 %v292, 10.0
    %v463 = vsub.f32 %v297, 10.0
    %v464 = vsub.f32 %v300, 10.0
    %v465 = vsub.f32 %v305, 10.0
    %v466 = vsub.f32 %v308, 10.0
    %v467 = vmul.f32 %v451, 1.442695
    %v468 = vpow.pop %v467
    %v469 = vmul.f32 %v452, 1.442695
    %v470 = vpow.pop %v469
    %v471 = vmul.f32 %v453, 1.442695
    %v472 = vpow.pop %v471
    %v473 = vmul.f32 %v454, 1.442695
    %v474 = vpow.pop %v473
    %v475 = vmul.f32 %v455, 1.442695
    %v476 = vpow.pop %v475
    %v477 = vmul.f32 %v456, 1.442695
    %v478 = vpow.pop %v477
    %v479 = vmul.f32 %v457, 1.442695
    %v480 = vpow.pop %v479
    %v481 = vmul.f32 %v458, 1.442695
    %v482 = vpow.pop %v481
    %v483 = vmul.f32 %v459, 1.442695
    %v484 = vpow.pop %v483
    %v485 = vmul.f32 %v460, 1.442695
    %v486 = vpow.pop %v485
    %v487 = vmul.f32 %v461, 1.442695
    %v488 = vpow.pop %v487
    %v489 = vmul.f32 %v462, 1.442695
    %v490 = vpow.pop %v489
    %v491 = vmul.f32 %v463, 1.442695
    %v492 = vpow.pop %v491
    %v493 = vmul.f32 %v464, 1.442695
    %v494 = vpow.pop %v493
    %v495 = vmul.f32 %v465, 1.442695
    %v496 = vpow.pop %v495
    %v497 = vmul.f32 %v466, 1.442695
    %v498 = vpow.pop %v497
    %v499 = vld [vmem:[%s5] sm:$0xff]
    %v500 = vld [vmem:[%s5 + $0x8] sm:$0xff]
    %v501 = vld [vmem:[%s5 + $0x10] sm:$0xff]
    %v502 = vld [vmem:[%s5 + $0x18] sm:$0xff]
    %v503 = vld [vmem:[%s5 + $0x20] sm:$0xff]
    %v504 = vld [vmem:[%s5 + $0x28] sm:$0xff]
    %v505 = vld [vmem:[%s5 + $0x30] sm:$0xff]
    %v506 = vld [vmem:[%s5 + $0x38] sm:$0xff]
    %v507 = vld [vmem:[%s5 + $0x40] sm:$0xff]
    %v508 = vld [vmem:[%s5 + $0x48] sm:$0xff]
    %v509 = vld [vmem:[%s5 + $0x50] sm:$0xff]
    %v510 = vld [vmem:[%s5 + $0x58] sm:$0xff]
    %v511 = vld [vmem:[%s5 + $0x60] sm:$0xff]
    %v512 = vld [vmem:[%s5 + $0x68] sm:$0xff]
    %v513 = vld [vmem:[%s5 + $0x70] sm:$0xff]
    %v514 = vld [vmem:[%s5 + $0x78] sm:$0xff]
    %v515 = vmul.f32 %v468, %v419
    %v516 = vmul.f32 %v470, %v420
    %v517 = vmul.f32 %v472, %v421
    %v518 = vmul.f32 %v474, %v422
    %v519 = vmul.f32 %v476, %v423
    %v520 = vmul.f32 %v478, %v424
    %v521 = vmul.f32 %v480, %v425
    %v522 = vmul.f32 %v482, %v426
    %v523 = vmul.f32 %v484, %v427
    %v524 = vmul.f32 %v486, %v428
    %v525 = vmul.f32 %v488, %v429
    %v526 = vmul.f32 %v490, %v430
    %v527 = vmul.f32 %v492, %v431
    %v528 = vmul.f32 %v494, %v432
    %v529 = vmul.f32 %v496, %v433
    %v530 = vmul.f32 %v498, %v434
    %531 = vadd.xlane.f32.xlu0 %v515
    %v532 = vpop.xlane.xlu0 %531
    %533 = vadd.xlane.f32.xlu0 %v516
    %v534 = vpop.xlane.xlu0 %533
    %535 = vadd.xlane.f32.xlu0 %v517
    %v536 = vpop.xlane.xlu0 %535
    %537 = vadd.xlane.f32.xlu0 %v518
    %v538 = vpop.xlane.xlu0 %537
    %539 = vadd.xlane.f32.xlu0 %v519
    %v540 = vpop.xlane.xlu0 %539
    %541 = vadd.xlane.f32.xlu0 %v520
    %v542 = vpop.xlane.xlu0 %541
    %543 = vadd.xlane.f32.xlu0 %v521
    %v544 = vpop.xlane.xlu0 %543
    %545 = vadd.xlane.f32.xlu0 %v522
    %v546 = vpop.xlane.xlu0 %545
    %547 = vadd.xlane.f32.xlu0 %v523
    %v548 = vpop.xlane.xlu0 %547
    %549 = vadd.xlane.f32.xlu0 %v524
    %v550 = vpop.xlane.xlu0 %549
    %551 = vadd.xlane.f32.xlu0 %v525
    %v552 = vpop.xlane.xlu0 %551
    %553 = vadd.xlane.f32.xlu0 %v526
    %v554 = vpop.xlane.xlu0 %553
    %555 = vadd.xlane.f32.xlu0 %v527
    %v556 = vpop.xlane.xlu0 %555
    %557 = vadd.xlane.f32.xlu0 %v528
    %v558 = vpop.xlane.xlu0 %557
    %559 = vadd.xlane.f32.xlu0 %v529
    %v560 = vpop.xlane.xlu0 %559
    %561 = vadd.xlane.f32.xlu0 %v530
    %v562 = vpop.xlane.xlu0 %561
    %v563 = vadd.f32 %v499, %v532
    %v564 = vadd.f32 %v500, %v534
    %v565 = vadd.f32 %v501, %v536
    %v566 = vadd.f32 %v502, %v538
    %v567 = vadd.f32 %v503, %v540
    %v568 = vadd.f32 %v504, %v542
    %v569 = vadd.f32 %v505, %v544
    %v570 = vadd.f32 %v506, %v546
    %v571 = vadd.f32 %v507, %v548
    %v572 = vadd.f32 %v508, %v550
    %v573 = vadd.f32 %v509, %v552
    %v574 = vadd.f32 %v510, %v554
    %v575 = vadd.f32 %v511, %v556
    %v576 = vadd.f32 %v512, %v558
    %v577 = vadd.f32 %v513, %v560
    %v578 = vadd.f32 %v514, %v562
    %vm579 = vcmask 7168
    %580 = vst.msk [vmem:[%s5] sm:$0xff] %vm579, %v563
    %581 = vst.msk [vmem:[%s5 + $0x8] sm:$0xff] %vm579, %v564
    %582 = vst.msk [vmem:[%s5 + $0x10] sm:$0xff] %vm579, %v565
    %583 = vst.msk [vmem:[%s5 + $0x18] sm:$0xff] %vm579, %v566
    %584 = vst.msk [vmem:[%s5 + $0x20] sm:$0xff] %vm579, %v567
    %585 = vst.msk [vmem:[%s5 + $0x28] sm:$0xff] %vm579, %v568
    %586 = vst.msk [vmem:[%s5 + $0x30] sm:$0xff] %vm579, %v569
    %587 = vst.msk [vmem:[%s5 + $0x38] sm:$0xff] %vm579, %v570
    %588 = vst.msk [vmem:[%s5 + $0x40] sm:$0xff] %vm579, %v571
    %589 = vst.msk [vmem:[%s5 + $0x48] sm:$0xff] %vm579, %v572
    %590 = vst.msk [vmem:[%s5 + $0x50] sm:$0xff] %vm579, %v573
    %591 = vst.msk [vmem:[%s5 + $0x58] sm:$0xff] %vm579, %v574
    %592 = vst.msk [vmem:[%s5 + $0x60] sm:$0xff] %vm579, %v575
    %593 = vst.msk [vmem:[%s5 + $0x68] sm:$0xff] %vm579, %v576
    %594 = vst.msk [vmem:[%s5 + $0x70] sm:$0xff] %vm579, %v577
    %595 = vst.msk [vmem:[%s5 + $0x78] sm:$0xff] %vm579, %v578
    %v596 = vld [vmem:[%s4] sm:$0xff]
    %v597 = vld [vmem:[%s4 + $0x8] sm:$0xff]
    %v598 = vld [vmem:[%s4 + $0x10] sm:$0xff]
    %v599 = vld [vmem:[%s4 + $0x18] sm:$0xff]
    %v600 = vld [vmem:[%s4 + $0x20] sm:$0xff]
    %v601 = vld [vmem:[%s4 + $0x28] sm:$0xff]
    %v602 = vld [vmem:[%s4 + $0x30] sm:$0xff]
    %v603 = vld [vmem:[%s4 + $0x38] sm:$0xff]
    %v604 = vld [vmem:[%s4 + $0x40] sm:$0xff]
    %v605 = vld [vmem:[%s4 + $0x48] sm:$0xff]
    %v606 = vld [vmem:[%s4 + $0x50] sm:$0xff]
    %v607 = vld [vmem:[%s4 + $0x58] sm:$0xff]
    %v608 = vld [vmem:[%s4 + $0x60] sm:$0xff]
    %v609 = vld [vmem:[%s4 + $0x68] sm:$0xff]
    %v610 = vld [vmem:[%s4 + $0x70] sm:$0xff]
    %v611 = vld [vmem:[%s4 + $0x78] sm:$0xff]
    %612 = vadd.xlane.f32.xlu0 %v435
    %v613 = vpop.xlane.xlu0 %612
    %614 = vadd.xlane.f32.xlu0 %v436
    %v615 = vpop.xlane.xlu0 %614
    %616 = vadd.xlane.f32.xlu0 %v437
    %v617 = vpop.xlane.xlu0 %616
    %618 = vadd.xlane.f32.xlu0 %v438
    %v619 = vpop.xlane.xlu0 %618
    %620 = vadd.xlane.f32.xlu0 %v439
    %v621 = vpop.xlane.xlu0 %620
    %622 = vadd.xlane.f32.xlu0 %v440
    %v623 = vpop.xlane.xlu0 %622
    %624 = vadd.xlane.f32.xlu0 %v441
    %v625 = vpop.xlane.xlu0 %624
    %626 = vadd.xlane.f32.xlu0 %v442
    %v627 = vpop.xlane.xlu0 %626
    %628 = vadd.xlane.f32.xlu0 %v443
    %v629 = vpop.xlane.xlu0 %628
    %630 = vadd.xlane.f32.xlu0 %v444
    %v631 = vpop.xlane.xlu0 %630
    %632 = vadd.xlane.f32.xlu0 %v445
    %v633 = vpop.xlane.xlu0 %632
    %634 = vadd.xlane.f32.xlu0 %v446
    %v635 = vpop.xlane.xlu0 %634
    %636 = vadd.xlane.f32.xlu0 %v447
    %v637 = vpop.xlane.xlu0 %636
    %638 = vadd.xlane.f32.xlu0 %v448
    %v639 = vpop.xlane.xlu0 %638
    %640 = vadd.xlane.f32.xlu0 %v449
    %v641 = vpop.xlane.xlu0 %640
    %642 = vadd.xlane.f32.xlu0 %v450
    %v643 = vpop.xlane.xlu0 %642
    %v644 = vadd.f32 %v596, %v613
    %v645 = vadd.f32 %v597, %v615
    %v646 = vadd.f32 %v598, %v617
    %v647 = vadd.f32 %v599, %v619
    %v648 = vadd.f32 %v600, %v621
    %v649 = vadd.f32 %v601, %v623
    %v650 = vadd.f32 %v602, %v625
    %v651 = vadd.f32 %v603, %v627
    %v652 = vadd.f32 %v604, %v629
    %v653 = vadd.f32 %v605, %v631
    %v654 = vadd.f32 %v606, %v633
    %v655 = vadd.f32 %v607, %v635
    %v656 = vadd.f32 %v608, %v637
    %v657 = vadd.f32 %v609, %v639
    %v658 = vadd.f32 %v610, %v641
    %v659 = vadd.f32 %v611, %v643
    %660 = vst.msk [vmem:[%s4] sm:$0xff] %vm579, %v644
    %661 = vst.msk [vmem:[%s4 + $0x8] sm:$0xff] %vm579, %v645
    %662 = vst.msk [vmem:[%s4 + $0x10] sm:$0xff] %vm579, %v646
    %663 = vst.msk [vmem:[%s4 + $0x18] sm:$0xff] %vm579, %v647
    %664 = vst.msk [vmem:[%s4 + $0x20] sm:$0xff] %vm579, %v648
    %665 = vst.msk [vmem:[%s4 + $0x28] sm:$0xff] %vm579, %v649
    %666 = vst.msk [vmem:[%s4 + $0x30] sm:$0xff] %vm579, %v650
    %667 = vst.msk [vmem:[%s4 + $0x38] sm:$0xff] %vm579, %v651
    %668 = vst.msk [vmem:[%s4 + $0x40] sm:$0xff] %vm579, %v652
    %669 = vst.msk [vmem:[%s4 + $0x48] sm:$0xff] %vm579, %v653
    %670 = vst.msk [vmem:[%s4 + $0x50] sm:$0xff] %vm579, %v654
    %671 = vst.msk [vmem:[%s4 + $0x58] sm:$0xff] %vm579, %v655
    %672 = vst.msk [vmem:[%s4 + $0x60] sm:$0xff] %vm579, %v656
    %673 = vst.msk [vmem:[%s4 + $0x68] sm:$0xff] %vm579, %v657
    %674 = vst.msk [vmem:[%s4 + $0x70] sm:$0xff] %vm579, %v658
    %675 = vst.msk [vmem:[%s4 + $0x78] sm:$0xff] %vm579, %v659
    %s676 = smul.u32 0, 128
    %s677 = sadd.s32 0, 1
    %s678 = smul.u32 %s677, 128
    %p679 = scmp.lt.s32.totalorder %s676, %s678
    %s680 = smul.u32 0, 128
    %s681 = sadd.s32 0, 1
    %s682 = smul.u32 %s681, 128
    %p683 = scmp.lt.s32.totalorder %s680, %s682
    %p684 = pnand %p679, %p683
    %p685 = pneg %p684
    // Predicated region
    $region26: #{tpu_custom_call.1} parent=1 // pred_check
      _
    $region27: #{tpu_custom_call.1} parent=1 // pred_check_branch
      %687 = sbr.rel (%p684) target = $region29
    $region28: #{tpu_custom_call.1} parent=1 // pred_region
      %v688 = vlaneseq
      %v689 = vshrl.u32 %v688, 7
      %v690 = vadd.s32 %v689, 8
      %v691 = vadd.s32 %v689, 16
      %v692 = vadd.s32 %v689, 24
      %v693 = vadd.s32 %v689, 32
      %v694 = vadd.s32 %v689, 40
      %v695 = vadd.s32 %v689, 48
      %v696 = vadd.s32 %v689, 56
      %v697 = vadd.s32 %v689, 64
      %v698 = vadd.s32 %v689, 72
      %v699 = vadd.s32 %v689, 80
      %v700 = vadd.s32 %v689, 88
      %v701 = vadd.s32 %v689, 96
      %v702 = vadd.s32 %v689, 104
      %v703 = vadd.s32 %v689, 112
      %v704 = vadd.s32 %v689, 120
      %v705 = vstv %s676
      %v706 = vadd.s32 %v705, %v689
      %v707 = vadd.s32 %v705, %v690
      %v708 = vadd.s32 %v705, %v691
      %v709 = vadd.s32 %v705, %v692
      %v710 = vadd.s32 %v705, %v693
      %v711 = vadd.s32 %v705, %v694
      %v712 = vadd.s32 %v705, %v695
      %v713 = vadd.s32 %v705, %v696
      %v714 = vadd.s32 %v705, %v697
      %v715 = vadd.s32 %v705, %v698
      %v716 = vadd.s32 %v705, %v699
      %v717 = vadd.s32 %v705, %v700
      %v718 = vadd.s32 %v705, %v701
      %v719 = vadd.s32 %v705, %v702
      %v720 = vadd.s32 %v705, %v703
      %v721 = vadd.s32 %v705, %v704
      %v722 = vlaneseq
      %v723 = vand.u32 %v722, 127
      %v724 = vstv %s680
      %v725 = vadd.s32 %v724, %v723
      %vm726 = vcmp.eq.s32.totalorder %v706, %v725
      %vm727 = vcmp.eq.s32.totalorder %v707, %v725
      %vm728 = vcmp.eq.s32.totalorder %v708, %v725
      %vm729 = vcmp.eq.s32.totalorder %v709, %v725
      %vm730 = vcmp.eq.s32.totalorder %v710, %v725
      %vm731 = vcmp.eq.s32.totalorder %v711, %v725
      %vm732 = vcmp.eq.s32.totalorder %v712, %v725
      %vm733 = vcmp.eq.s32.totalorder %v713, %v725
      %vm734 = vcmp.eq.s32.totalorder %v714, %v725
      %vm735 = vcmp.eq.s32.totalorder %v715, %v725
      %vm736 = vcmp.eq.s32.totalorder %v716, %v725
      %vm737 = vcmp.eq.s32.totalorder %v717, %v725
      %vm738 = vcmp.eq.s32.totalorder %v718, %v725
      %vm739 = vcmp.eq.s32.totalorder %v719, %v725
      %vm740 = vcmp.eq.s32.totalorder %v720, %v725
      %vm741 = vcmp.eq.s32.totalorder %v721, %v725
      %v742 = vld [vmem:[%s5] sm:$0xff]
      %v743 = vld [vmem:[%s5 + $0x8] sm:$0xff]
      %v744 = vld [vmem:[%s5 + $0x10] sm:$0xff]
      %v745 = vld [vmem:[%s5 + $0x18] sm:$0xff]
      %v746 = vld [vmem:[%s5 + $0x20] sm:$0xff]
      %v747 = vld [vmem:[%s5 + $0x28] sm:$0xff]
      %v748 = vld [vmem:[%s5 + $0x30] sm:$0xff]
      %v749 = vld [vmem:[%s5 + $0x38] sm:$0xff]
      %v750 = vld [vmem:[%s5 + $0x40] sm:$0xff]
      %v751 = vld [vmem:[%s5 + $0x48] sm:$0xff]
      %v752 = vld [vmem:[%s5 + $0x50] sm:$0xff]
      %v753 = vld [vmem:[%s5 + $0x58] sm:$0xff]
      %v754 = vld [vmem:[%s5 + $0x60] sm:$0xff]
      %v755 = vld [vmem:[%s5 + $0x68] sm:$0xff]
      %v756 = vld [vmem:[%s5 + $0x70] sm:$0xff]
      %v757 = vld [vmem:[%s5 + $0x78] sm:$0xff]
      %v758 = vmul.f32 %v468, %v414
      %v759 = vmul.f32 %v470, %v414
      %v760 = vmul.f32 %v472, %v414
      %v761 = vmul.f32 %v474, %v414
      %v762 = vmul.f32 %v476, %v414
      %v763 = vmul.f32 %v478, %v414
      %v764 = vmul.f32 %v480, %v414
      %v765 = vmul.f32 %v482, %v414
      %v766 = vmul.f32 %v484, %v414
      %v767 = vmul.f32 %v486, %v414
      %v768 = vmul.f32 %v488, %v414
      %v769 = vmul.f32 %v490, %v414
      %v770 = vmul.f32 %v492, %v414
      %v771 = vmul.f32 %v494, %v414
      %v772 = vmul.f32 %v496, %v414
      %v773 = vmul.f32 %v498, %v414
      %v774 = vsel %vm726, %v758, 0.0
      %v775 = vsel %vm727, %v759, 0.0
      %v776 = vsel %vm728, %v760, 0.0
      %v777 = vsel %vm729, %v761, 0.0
      %v778 = vsel %vm730, %v762, 0.0
      %v779 = vsel %vm731, %v763, 0.0
      %v780 = vsel %vm732, %v764, 0.0
      %v781 = vsel %vm733, %v765, 0.0
      %v782 = vsel %vm734, %v766, 0.0
      %v783 = vsel %vm735, %v767, 0.0
      %v784 = vsel %vm736, %v768, 0.0
      %v785 = vsel %vm737, %v769, 0.0
      %v786 = vsel %vm738, %v770, 0.0
      %v787 = vsel %vm739, %v771, 0.0
      %v788 = vsel %vm740, %v772, 0.0
      %v789 = vsel %vm741, %v773, 0.0
      %790 = vadd.xlane.f32.xlu0 %v774
      %v791 = vpop.xlane.xlu0 %790
      %792 = vadd.xlane.f32.xlu0 %v775
      %v793 = vpop.xlane.xlu0 %792
      %794 = vadd.xlane.f32.xlu0 %v776
      %v795 = vpop.xlane.xlu0 %794
      %796 = vadd.xlane.f32.xlu0 %v777
      %v797 = vpop.xlane.xlu0 %796
      %798 = vadd.xlane.f32.xlu0 %v778
      %v799 = vpop.xlane.xlu0 %798
      %800 = vadd.xlane.f32.xlu0 %v779
      %v801 = vpop.xlane.xlu0 %800
      %802 = vadd.xlane.f32.xlu0 %v780
      %v803 = vpop.xlane.xlu0 %802
      %804 = vadd.xlane.f32.xlu0 %v781
      %v805 = vpop.xlane.xlu0 %804
      %806 = vadd.xlane.f32.xlu0 %v782
      %v807 = vpop.xlane.xlu0 %806
      %808 = vadd.xlane.f32.xlu0 %v783
      %v809 = vpop.xlane.xlu0 %808
      %810 = vadd.xlane.f32.xlu0 %v784
      %v811 = vpop.xlane.xlu0 %810
      %812 = vadd.xlane.f32.xlu0 %v785
      %v813 = vpop.xlane.xlu0 %812
      %814 = vadd.xlane.f32.xlu0 %v786
      %v815 = vpop.xlane.xlu0 %814
      %816 = vadd.xlane.f32.xlu0 %v787
      %v817 = vpop.xlane.xlu0 %816
      %818 = vadd.xlane.f32.xlu0 %v788
      %v819 = vpop.xlane.xlu0 %818
      %820 = vadd.xlane.f32.xlu0 %v789
      %v821 = vpop.xlane.xlu0 %820
      %v822 = vsub.f32 %v742, %v791
      %v823 = vsub.f32 %v743, %v793
      %v824 = vsub.f32 %v744, %v795
      %v825 = vsub.f32 %v745, %v797
      %v826 = vsub.f32 %v746, %v799
      %v827 = vsub.f32 %v747, %v801
      %v828 = vsub.f32 %v748, %v803
      %v829 = vsub.f32 %v749, %v805
      %v830 = vsub.f32 %v750, %v807
      %v831 = vsub.f32 %v751, %v809
      %v832 = vsub.f32 %v752, %v811
      %v833 = vsub.f32 %v753, %v813
      %v834 = vsub.f32 %v754, %v815
      %v835 = vsub.f32 %v755, %v817
      %v836 = vsub.f32 %v756, %v819
      %v837 = vsub.f32 %v757, %v821
      %838 = vst.msk [vmem:[%s5] sm:$0xff] %vm579, %v822
      %839 = vst.msk [vmem:[%s5 + $0x8] sm:$0xff] %vm579, %v823
      %840 = vst.msk [vmem:[%s5 + $0x10] sm:$0xff] %vm579, %v824
      %841 = vst.msk [vmem:[%s5 + $0x18] sm:$0xff] %vm579, %v825
      %842 = vst.msk [vmem:[%s5 + $0x20] sm:$0xff] %vm579, %v826
      %843 = vst.msk [vmem:[%s5 + $0x28] sm:$0xff] %vm579, %v827
      %844 = vst.msk [vmem:[%s5 + $0x30] sm:$0xff] %vm579, %v828
      %845 = vst.msk [vmem:[%s5 + $0x38] sm:$0xff] %vm579, %v829
      %846 = vst.msk [vmem:[%s5 + $0x40] sm:$0xff] %vm579, %v830
      %847 = vst.msk [vmem:[%s5 + $0x48] sm:$0xff] %vm579, %v831
      %848 = vst.msk [vmem:[%s5 + $0x50] sm:$0xff] %vm579, %v832
      %849 = vst.msk [vmem:[%s5 + $0x58] sm:$0xff] %vm579, %v833
      %850 = vst.msk [vmem:[%s5 + $0x60] sm:$0xff] %vm579, %v834
      %851 = vst.msk [vmem:[%s5 + $0x68] sm:$0xff] %vm579, %v835
      %852 = vst.msk [vmem:[%s5 + $0x70] sm:$0xff] %vm579, %v836
      %853 = vst.msk [vmem:[%s5 + $0x78] sm:$0xff] %vm579, %v837
      %v854 = vld [vmem:[%s4] sm:$0xff]
      %v855 = vld [vmem:[%s4 + $0x8] sm:$0xff]
      %v856 = vld [vmem:[%s4 + $0x10] sm:$0xff]
      %v857 = vld [vmem:[%s4 + $0x18] sm:$0xff]
      %v858 = vld [vmem:[%s4 + $0x20] sm:$0xff]
      %v859 = vld [vmem:[%s4 + $0x28] sm:$0xff]
      %v860 = vld [vmem:[%s4 + $0x30] sm:$0xff]
      %v861 = vld [vmem:[%s4 + $0x38] sm:$0xff]
      %v862 = vld [vmem:[%s4 + $0x40] sm:$0xff]
      %v863 = vld [vmem:[%s4 + $0x48] sm:$0xff]
      %v864 = vld [vmem:[%s4 + $0x50] sm:$0xff]
      %v865 = vld [vmem:[%s4 + $0x58] sm:$0xff]
      %v866 = vld [vmem:[%s4 + $0x60] sm:$0xff]
      %v867 = vld [vmem:[%s4 + $0x68] sm:$0xff]
      %v868 = vld [vmem:[%s4 + $0x70] sm:$0xff]
      %v869 = vld [vmem:[%s4 + $0x78] sm:$0xff]
      %v870 = vsel %vm726, %v249, 0.0
      %v871 = vsel %vm727, %v252, 0.0
      %v872 = vsel %vm728, %v257, 0.0
      %v873 = vsel %vm729, %v260, 0.0
      %v874 = vsel %vm730, %v265, 0.0
      %v875 = vsel %vm731, %v268, 0.0
      %v876 = vsel %vm732, %v273, 0.0
      %v877 = vsel %vm733, %v276, 0.0
      %v878 = vsel %vm734, %v281, 0.0
      %v879 = vsel %vm735, %v284, 0.0
      %v880 = vsel %vm736, %v289, 0.0
      %v881 = vsel %vm737, %v292, 0.0
      %v882 = vsel %vm738, %v297, 0.0
      %v883 = vsel %vm739, %v300, 0.0
      %v884 = vsel %vm740, %v305, 0.0
      %v885 = vsel %vm741, %v308, 0.0
      %886 = vadd.xlane.f32.xlu0 %v870
      %v887 = vpop.xlane.xlu0 %886
      %888 = vadd.xlane.f32.xlu0 %v871
      %v889 = vpop.xlane.xlu0 %888
      %890 = vadd.xlane.f32.xlu0 %v872
      %v891 = vpop.xlane.xlu0 %890
      %892 = vadd.xlane.f32.xlu0 %v873
      %v893 = vpop.xlane.xlu0 %892
      %894 = vadd.xlane.f32.xlu0 %v874
      %v895 = vpop.xlane.xlu0 %894
      %896 = vadd.xlane.f32.xlu0 %v875
      %v897 = vpop.xlane.xlu0 %896
      %898 = vadd.xlane.f32.xlu0 %v876
      %v899 = vpop.xlane.xlu0 %898
      %900 = vadd.xlane.f32.xlu0 %v877
      %v901 = vpop.xlane.xlu0 %900
      %902 = vadd.xlane.f32.xlu0 %v878
      %v903 = vpop.xlane.xlu0 %902
      %904 = vadd.xlane.f32.xlu0 %v879
      %v905 = vpop.xlane.xlu0 %904
      %906 = vadd.xlane.f32.xlu0 %v880
      %v907 = vpop.xlane.xlu0 %906
      %908 = vadd.xlane.f32.xlu0 %v881
      %v909 = vpop.xlane.xlu0 %908
      %910 = vadd.xlane.f32.xlu0 %v882
      %v911 = vpop.xlane.xlu0 %910
      %912 = vadd.xlane.f32.xlu0 %v883
      %v913 = vpop.xlane.xlu0 %912
      %914 = vadd.xlane.f32.xlu0 %v884
      %v915 = vpop.xlane.xlu0 %914
      %916 = vadd.xlane.f32.xlu0 %v885
      %v917 = vpop.xlane.xlu0 %916
      %v918 = vsub.f32 %v854, %v887
      %v919 = vsub.f32 %v855, %v889
      %v920 = vsub.f32 %v856, %v891
      %v921 = vsub.f32 %v857, %v893
      %v922 = vsub.f32 %v858, %v895
      %v923 = vsub.f32 %v859, %v897
      %v924 = vsub.f32 %v860, %v899
      %v925 = vsub.f32 %v861, %v901
      %v926 = vsub.f32 %v862, %v903
      %v927 = vsub.f32 %v863, %v905
      %v928 = vsub.f32 %v864, %v907
      %v929 = vsub.f32 %v865, %v909
      %v930 = vsub.f32 %v866, %v911
      %v931 = vsub.f32 %v867, %v913
      %v932 = vsub.f32 %v868, %v915
      %v933 = vsub.f32 %v869, %v917
      %934 = vst.msk [vmem:[%s4] sm:$0xff] %vm579, %v918
      %935 = vst.msk [vmem:[%s4 + $0x8] sm:$0xff] %vm579, %v919
      %936 = vst.msk [vmem:[%s4 + $0x10] sm:$0xff] %vm579, %v920
      %937 = vst.msk [vmem:[%s4 + $0x18] sm:$0xff] %vm579, %v921
      %938 = vst.msk [vmem:[%s4 + $0x20] sm:$0xff] %vm579, %v922
      %939 = vst.msk [vmem:[%s4 + $0x28] sm:$0xff] %vm579, %v923
      %940 = vst.msk [vmem:[%s4 + $0x30] sm:$0xff] %vm579, %v924
      %941 = vst.msk [vmem:[%s4 + $0x38] sm:$0xff] %vm579, %v925
      %942 = vst.msk [vmem:[%s4 + $0x40] sm:$0xff] %vm579, %v926
      %943 = vst.msk [vmem:[%s4 + $0x48] sm:$0xff] %vm579, %v927
      %944 = vst.msk [vmem:[%s4 + $0x50] sm:$0xff] %vm579, %v928
      %945 = vst.msk [vmem:[%s4 + $0x58] sm:$0xff] %vm579, %v929
      %946 = vst.msk [vmem:[%s4 + $0x60] sm:$0xff] %vm579, %v930
      %947 = vst.msk [vmem:[%s4 + $0x68] sm:$0xff] %vm579, %v931
      %948 = vst.msk [vmem:[%s4 + $0x70] sm:$0xff] %vm579, %v932
      %949 = vst.msk [vmem:[%s4 + $0x78] sm:$0xff] %vm579, %v933
    $region29: #{tpu_custom_call.1} parent=1 // pred_fallthru
      _
    // Predicated region
    $region30: #{tpu_custom_call.1} parent=1 // pred_check
      %p950 = pneg %p32
    $region31: #{tpu_custom_call.1} parent=1 // pred_check_branch
      %952 = sbr.rel (%p950) target = $region33
    $region32: #{tpu_custom_call.1} parent=1 // pred_region
      %v953 = vld [vmem:[%s5] sm:$0xff]
      %v954 = vld [vmem:[%s5 + $0x8] sm:$0xff]
      %v955 = vld [vmem:[%s5 + $0x10] sm:$0xff]
      %v956 = vld [vmem:[%s5 + $0x18] sm:$0xff]
      %v957 = vld [vmem:[%s5 + $0x20] sm:$0xff]
      %v958 = vld [vmem:[%s5 + $0x28] sm:$0xff]
      %v959 = vld [vmem:[%s5 + $0x30] sm:$0xff]
      %v960 = vld [vmem:[%s5 + $0x38] sm:$0xff]
      %v961 = vld [vmem:[%s5 + $0x40] sm:$0xff]
      %v962 = vld [vmem:[%s5 + $0x48] sm:$0xff]
      %v963 = vld [vmem:[%s5 + $0x50] sm:$0xff]
      %v964 = vld [vmem:[%s5 + $0x58] sm:$0xff]
      %v965 = vld [vmem:[%s5 + $0x60] sm:$0xff]
      %v966 = vld [vmem:[%s5 + $0x68] sm:$0xff]
      %v967 = vld [vmem:[%s5 + $0x70] sm:$0xff]
      %v968 = vld [vmem:[%s5 + $0x78] sm:$0xff]
      %v969 = vlog2.pop %v953
      %v970 = vmul.f32 %v969, 0.6931472
      %v971 = vlog2.pop %v954
      %v972 = vmul.f32 %v971, 0.6931472
      %v973 = vlog2.pop %v955
      %v974 = vmul.f32 %v973, 0.6931472
      %v975 = vlog2.pop %v956
      %v976 = vmul.f32 %v975, 0.6931472
      %v977 = vlog2.pop %v957
      %v978 = vmul.f32 %v977, 0.6931472
      %v979 = vlog2.pop %v958
      %v980 = vmul.f32 %v979, 0.6931472
      %v981 = vlog2.pop %v959
      %v982 = vmul.f32 %v981, 0.6931472
      %v983 = vlog2.pop %v960
      %v984 = vmul.f32 %v983, 0.6931472
      %v985 = vlog2.pop %v961
      %v986 = vmul.f32 %v985, 0.6931472
      %v987 = vlog2.pop %v962
      %v988 = vmul.f32 %v987, 0.6931472
      %v989 = vlog2.pop %v963
      %v990 = vmul.f32 %v989, 0.6931472
      %v991 = vlog2.pop %v964
      %v992 = vmul.f32 %v991, 0.6931472
      %v993 = vlog2.pop %v965
      %v994 = vmul.f32 %v993, 0.6931472
      %v995 = vlog2.pop %v966
      %v996 = vmul.f32 %v995, 0.6931472
      %v997 = vlog2.pop %v967
      %v998 = vmul.f32 %v997, 0.6931472
      %v999 = vlog2.pop %v968
      %v1000 = vmul.f32 %v999, 0.6931472
      %v1001 = vadd.f32 %v970, 10.0
      %v1002 = vadd.f32 %v972, 10.0
      %v1003 = vadd.f32 %v974, 10.0
      %v1004 = vadd.f32 %v976, 10.0
      %v1005 = vadd.f32 %v978, 10.0
      %v1006 = vadd.f32 %v980, 10.0
      %v1007 = vadd.f32 %v982, 10.0
      %v1008 = vadd.f32 %v984, 10.0
      %v1009 = vadd.f32 %v986, 10.0
      %v1010 = vadd.f32 %v988, 10.0
      %v1011 = vadd.f32 %v990, 10.0
      %v1012 = vadd.f32 %v992, 10.0
      %v1013 = vadd.f32 %v994, 10.0
      %v1014 = vadd.f32 %v996, 10.0
      %v1015 = vadd.f32 %v998, 10.0
      %v1016 = vadd.f32 %v1000, 10.0
      %1017 = vst.msk [vmem:[%s5] sm:$0xff] %vm579, %v1001
      %1018 = vst.msk [vmem:[%s5 + $0x8] sm:$0xff] %vm579, %v1002
      %1019 = vst.msk [vmem:[%s5 + $0x10] sm:$0xff] %vm579, %v1003
      %1020 = vst.msk [vmem:[%s5 + $0x18] sm:$0xff] %vm579, %v1004
      %1021 = vst.msk [vmem:[%s5 + $0x20] sm:$0xff] %vm579, %v1005
      %1022 = vst.msk [vmem:[%s5 + $0x28] sm:$0xff] %vm579, %v1006
      %1023 = vst.msk [vmem:[%s5 + $0x30] sm:$0xff] %vm579, %v1007
      %1024 = vst.msk [vmem:[%s5 + $0x38] sm:$0xff] %vm579, %v1008
      %1025 = vst.msk [vmem:[%s5 + $0x40] sm:$0xff] %vm579, %v1009
      %1026 = vst.msk [vmem:[%s5 + $0x48] sm:$0xff] %vm579, %v1010
      %1027 = vst.msk [vmem:[%s5 + $0x50] sm:$0xff] %vm579, %v1011
      %1028 = vst.msk [vmem:[%s5 + $0x58] sm:$0xff] %vm579, %v1012
      %1029 = vst.msk [vmem:[%s5 + $0x60] sm:$0xff] %vm579, %v1013
      %1030 = vst.msk [vmem:[%s5 + $0x68] sm:$0xff] %vm579, %v1014
      %1031 = vst.msk [vmem:[%s5 + $0x70] sm:$0xff] %vm579, %v1015
      %1032 = vst.msk [vmem:[%s5 + $0x78] sm:$0xff] %vm579, %v1016
    $region33: #{tpu_custom_call.1} parent=1 // pred_fallthru
      _
    // Predicated region
    $region34: #{tpu_custom_call.1} parent=1 // pred_check
      _
    $region35: #{tpu_custom_call.1} parent=1 // pred_check_branch
      %1034 = sbr.rel (0) target = $region37
    $region36: #{tpu_custom_call.1} parent=1 // pred_region
      _
    $region37: #{tpu_custom_call.1} parent=1 // pred_fallthru
      _
    // Predicated region
    $region38: #{tpu_custom_call.1} parent=1 // pred_check
      _
    $region39: #{tpu_custom_call.1} parent=1 // pred_check_branch
      %1036 = sbr.rel (0) target = $region41
    $region40: #{tpu_custom_call.1} parent=1 // pred_region
      _
    $region41: #{tpu_custom_call.1} parent=1 // pred_fallthru
      _
    // Predicated region
    $region42: #{tpu_custom_call.1} parent=1 // pred_check
      _
    $region43: #{tpu_custom_call.1} parent=1 // pred_check_branch
      %1038 = sbr.rel (0) target = $region45
    $region44: #{tpu_custom_call.1} parent=1 // pred_region
      _
    $region45: #{tpu_custom_call.1} parent=1 // pred_fallthru
      _
    // Predicated region
    $region46: #{tpu_custom_call.1} parent=1 // pred_check
      _
    $region47: #{tpu_custom_call.1} parent=1 // pred_check_branch
      %1040 = sbr.rel (0) target = $region49
    $region48: #{tpu_custom_call.1} parent=1 // pred_region
      _
    $region49: #{tpu_custom_call.1} parent=1 // pred_fallthru
      _
    %1041 = vsyncpa [#allocation3], 1

</llo_original>
